<compile_context>
chip_gen: v5e
topology: v5e:2x2
jax: 0.10.0
libtpu: 0.0.40
codegen_flags: <defaults>
</compile_context>

<pallas_src>
import jax
import jax.numpy as jnp
from jax.experimental import pallas as pl
from jax.experimental.pallas import tpu as pltpu

OUT_DIM = 9
PAD_N = 128  # lane-dense padded output width


def mlp_kernel(x_ref, w1_ref, w2_ref, w34_ref, b_ref, o_ref):
    # All weights + one TB-row activation tile fit comfortably in VMEM.
    x = x_ref[...]

    b1 = b_ref[0:1, 0:25]   # (1, 25)
    b2 = b_ref[1:2, 0:54]   # (1, 54)
    b34 = b_ref[2:3, :]     # (1, 128) (zero-padded past column 9)

    # Linear(15, 25) + Sigmoid
    h = jnp.dot(x, w1_ref[...], preferred_element_type=jnp.float32) + b1
    h = jax.nn.sigmoid(h)
    # Linear(25, 54) + Sigmoid
    h = jnp.dot(h, w2_ref[...], preferred_element_type=jnp.float32) + b2
    h = jax.nn.sigmoid(h)
    # Fused Linear(54, 9) @ Linear(9, 9), padded to 128 output lanes.
    o_ref[...] = (
        jnp.dot(h, w34_ref[...], preferred_element_type=jnp.float32) + b34
    )


def prepare_params(params):
    """Fuse the last two linear layers and pack/pad operands for the kernel."""
    (w1, b1, w2, b2, w3, b3, w4, b4) = params
    # (h @ W3 + b3) @ W4 + b4 == h @ (W3 @ W4) + (b3 @ W4 + b4)
    w34 = w3 @ w4                      # (54, 9)
    b34 = b3 @ w4 + b4                 # (1, 9)
    # Lane-dense padding of the output dim: 9 -> 128.
    w34_pad = jnp.zeros((w34.shape[0], PAD_N), jnp.float32).at[:, :OUT_DIM].set(w34)
    # Pack all biases into one (8, 128) buffer (rows 0..2 used).
    b_all = jnp.zeros((8, PAD_N), jnp.float32)
    b_all = b_all.at[0, : b1.shape[1]].set(b1[0])
    b_all = b_all.at[1, : b2.shape[1]].set(b2[0])
    b_all = b_all.at[2, :OUT_DIM].set(b34[0])
    return w1, w2, w34_pad, b_all


@jax.jit
def mlp_forward(x, params):
    w1, w2, w34_pad, b_all = prepare_params(params)
    B, D_in = x.shape
    # Batch tile: up to 512 rows (good pipelining for large B), multiple of 8.
    TB = min(512, ((B + 7) // 8) * 8)
    grid = (pl.cdiv(B, TB),)

    resident = lambda a: pl.BlockSpec(a.shape, lambda i: (0,) * a.ndim)

    out_padded = pl.pallas_call(
        mlp_kernel,
        out_shape=jax.ShapeDtypeStruct((B, PAD_N), jnp.float32),
        grid=grid,
        in_specs=[
            pl.BlockSpec((TB, D_in), lambda i: (i, 0)),  # x: tiled over batch
            resident(w1),                                # weights stay VMEM-resident
            resident(w2),
            resident(w34_pad),
            resident(b_all),
        ],
        out_specs=pl.BlockSpec((TB, PAD_N), lambda i: (i, 0)),
        compiler_params=pltpu.CompilerParams(
            dimension_semantics=("parallel",)
        ),
    )(x, w1, w2, w34_pad, b_all)
    return out_padded[:, :OUT_DIM]


def init_params(key):
    # Deterministic synthetic parameters (shapes from the module __init__).
    dims = [(15, 25), (25, 54), (54, 9), (9, 9)]
    params = []
    for i, (d_in, d_out) in enumerate(dims):
        kw, kb = jax.random.split(jax.random.fold_in(key, i))
        w = jax.random.normal(kw, (d_in, d_out), jnp.float32) * 0.1
        b = jax.random.normal(kb, (1, d_out), jnp.float32) * 0.1
        params += [w, b]
    return tuple(params)


def reference_forward(x, params):
    (w1, b1, w2, b2, w3, b3, w4, b4) = params
    h = jax.nn.sigmoid(x @ w1 + b1)
    h = jax.nn.sigmoid(h @ w2 + b2)
    h = h @ w3 + b3
    return h @ w4 + b4


# TODO(synk): `state_propagation` is a host-side Python while-loop over single
# state vectors (dict bookkeeping, torch.tensor rebuilds); it is not part of
# `forward` and is intentionally not translated to a kernel.

if __name__ == "__main__":
    key = jax.random.PRNGKey(0)
    kx, kp = jax.random.split(key)
    batch = 8
    x = jax.random.normal(kx, (batch, 15), jnp.float32)
    params = init_params(kp)

    out = mlp_forward(x, params)
    out = jax.block_until_ready(out)

    ref = reference_forward(x, params)
    assert out.shape == (batch, OUT_DIM)
    # Slightly relaxed tolerance: the offline fusion of the last two linear
    # layers reorders f32 accumulation (rounding-level differences only).
    assert jnp.allclose(out, ref, atol=1e-4, rtol=1e-4)
    print("KERNEL_OK")
</pallas_src>

<mosaic_0001>
module attributes {stable_mosaic.version = 11 : i64} {
  func.func @mlp_kernel(%arg0: i32, %arg1: memref<8x15xf32, #tpu.memory_space<vmem>>, %arg2: memref<15x25xf32, #tpu.memory_space<vmem>>, %arg3: memref<25x54xf32, #tpu.memory_space<vmem>>, %arg4: memref<54x128xf32, #tpu.memory_space<vmem>>, %arg5: memref<8x128xf32, #tpu.memory_space<vmem>>, %arg6: memref<8x128xf32, #tpu.memory_space<vmem>>) attributes {dimension_semantics = [#tpu.dimension_semantics<parallel>], iteration_bounds = array<i64: 1>, scalar_prefetch = 0 : i64, scratch_operands = 0 : i64, tpu.core_type = #tpu.core_type<tc>, window_params = [{transform_indices = @transform_0, window_bounds = array<i64: 8, 15>}, {pipeline_mode = #tpu.pipeline_mode<synchronous>, transform_indices = @transform_1, window_bounds = array<i64: 15, 25>}, {pipeline_mode = #tpu.pipeline_mode<synchronous>, transform_indices = @transform_2, window_bounds = array<i64: 25, 54>}, {pipeline_mode = #tpu.pipeline_mode<synchronous>, transform_indices = @transform_3, window_bounds = array<i64: 54, 128>}, {pipeline_mode = #tpu.pipeline_mode<synchronous>, transform_indices = @transform_4, window_bounds = array<i64: 8, 128>}, {transform_indices = @transform_5, window_bounds = array<i64: 8, 128>}]} {
    %c0 = arith.constant 0 : index
    %c0_0 = arith.constant 0 : index
    %0 = vector.load %arg1[%c0, %c0_0] : memref<8x15xf32, #tpu.memory_space<vmem>>, vector<8x15xf32>
    %c0_1 = arith.constant 0 : index
    %c0_2 = arith.constant 0 : index
    %1 = vector.load %arg5[%c0_1, %c0_2] : memref<8x128xf32, #tpu.memory_space<vmem>>, vector<1x25xf32>
    %c1 = arith.constant 1 : index
    %c0_3 = arith.constant 0 : index
    %2 = vector.load %arg5[%c1, %c0_3] : memref<8x128xf32, #tpu.memory_space<vmem>>, vector<1x54xf32>
    %c2 = arith.constant 2 : index
    %c0_4 = arith.constant 0 : index
    %3 = vector.load %arg5[%c2, %c0_4] : memref<8x128xf32, #tpu.memory_space<vmem>>, vector<1x128xf32>
    %c0_5 = arith.constant 0 : index
    %c0_6 = arith.constant 0 : index
    %4 = vector.load %arg2[%c0_5, %c0_6] : memref<15x25xf32, #tpu.memory_space<vmem>>, vector<15x25xf32>
    %cst = arith.constant dense<0.000000e+00> : vector<8x25xf32>
    %5 = tpu.matmul %0, %4, %cst {dimension_numbers = #tpu.dot_dimension_numbers<[1], [0], [0], [1], [0, 0, 1, 1], [], []>} : vector<8x15xf32>, vector<15x25xf32>, vector<8x25xf32> -> vector<8x25xf32>
    %6 = vector.broadcast %1 : vector<1x25xf32> to vector<8x25xf32>
    %7 = arith.addf %5, %6 : vector<8x25xf32>
    %8 = arith.negf %7 : vector<8x25xf32>
    %9 = math.exp %8 : vector<8x25xf32>
    %cst_7 = arith.constant 1.000000e+00 : f32
    %10 = vector.broadcast %cst_7 : f32 to vector<8x25xf32>
    %11 = arith.addf %10, %9 : vector<8x25xf32>
    %12 = arith.divf %10, %11 : vector<8x25xf32>
    %c0_8 = arith.constant 0 : index
    %c0_9 = arith.constant 0 : index
    %13 = vector.load %arg3[%c0_8, %c0_9] : memref<25x54xf32, #tpu.memory_space<vmem>>, vector<25x54xf32>
    %cst_10 = arith.constant dense<0.000000e+00> : vector<8x54xf32>
    %14 = tpu.matmul %12, %13, %cst_10 {dimension_numbers = #tpu.dot_dimension_numbers<[1], [0], [0], [1], [0, 0, 1, 1], [], []>} : vector<8x25xf32>, vector<25x54xf32>, vector<8x54xf32> -> vector<8x54xf32>
    %15 = vector.broadcast %2 : vector<1x54xf32> to vector<8x54xf32>
    %16 = arith.addf %14, %15 : vector<8x54xf32>
    %17 = arith.negf %16 : vector<8x54xf32>
    %18 = math.exp %17 : vector<8x54xf32>
    %cst_11 = arith.constant 1.000000e+00 : f32
    %19 = vector.broadcast %cst_11 : f32 to vector<8x54xf32>
    %20 = arith.addf %19, %18 : vector<8x54xf32>
    %21 = arith.divf %19, %20 : vector<8x54xf32>
    %c0_12 = arith.constant 0 : index
    %c0_13 = arith.constant 0 : index
    %22 = vector.load %arg4[%c0_12, %c0_13] : memref<54x128xf32, #tpu.memory_space<vmem>>, vector<54x128xf32>
    %cst_14 = arith.constant dense<0.000000e+00> : vector<8x128xf32>
    %23 = tpu.matmul %21, %22, %cst_14 {dimension_numbers = #tpu.dot_dimension_numbers<[1], [0], [0], [1], [0, 0, 1, 1], [], []>} : vector<8x54xf32>, vector<54x128xf32>, vector<8x128xf32> -> vector<8x128xf32>
    %24 = vector.broadcast %3 : vector<1x128xf32> to vector<8x128xf32>
    %25 = arith.addf %23, %24 : vector<8x128xf32>
    %c0_15 = arith.constant 0 : index
    %c0_16 = arith.constant 0 : index
    %26 = vector.load %arg6[%c0_15, %c0_16] : memref<8x128xf32, #tpu.memory_space<vmem>>, vector<8x128xf32>
    tpu.vector_store %arg6[%c0_15, %c0_16], %25 {strides = array<i32>} : memref<8x128xf32, #tpu.memory_space<vmem>>, vector<8x128xf32>,
    return
  }
  func.func @transform_0(%arg0: i32) -> (i32, i32) {
    %c0_i32 = arith.constant 0 : i32
    %c0_i32_0 = arith.constant 0 : i32
    return %arg0, %c0_i32 : i32, i32
  }
  func.func @transform_1(%arg0: i32) -> (i32, i32) {
    %c0_i32 = arith.constant 0 : i32
    %c0_i32_0 = arith.constant 0 : i32
    %c0_i32_1 = arith.constant 0 : i32
    return %c0_i32, %c0_i32_0 : i32, i32
  }
  func.func @transform_2(%arg0: i32) -> (i32, i32) {
    %c0_i32 = arith.constant 0 : i32
    %c0_i32_0 = arith.constant 0 : i32
    %c0_i32_1 = arith.constant 0 : i32
    return %c0_i32, %c0_i32_0 : i32, i32
  }
  func.func @transform_3(%arg0: i32) -> (i32, i32) {
    %c0_i32 = arith.constant 0 : i32
    %c0_i32_0 = arith.constant 0 : i32
    %c0_i32_1 = arith.constant 0 : i32
    return %c0_i32, %c0_i32_0 : i32, i32
  }
  func.func @transform_4(%arg0: i32) -> (i32, i32) {
    %c0_i32 = arith.constant 0 : i32
    %c0_i32_0 = arith.constant 0 : i32
    %c0_i32_1 = arith.constant 0 : i32
    return %c0_i32, %c0_i32_0 : i32, i32
  }
  func.func @transform_5(%arg0: i32) -> (i32, i32) {
    %c0_i32 = arith.constant 0 : i32
    %c0_i32_0 = arith.constant 0 : i32
    return %arg0, %c0_i32 : i32, i32
  }
}

</mosaic_0001>

<llo_original>
// kernel: mlp_forward.1
$region0: #{mlp_forward.1}
  #allocation0 [shape = 'u32[]', space=smem, size = 0x4, offset = 0x4, fixed_abs, tag = 'smem constant byte address 0x4 - core index']
  #allocation1 [shape = 'u32[72,128]{1,0:T(1,128)}', space=vmem, size = 0x9000, scoped, tag = 'internal scratch']
  %s0 = inlined_call_operand.vmem [shape: f32[8,15], index: 0, kind: input, shape index: {}]
  %s1 = inlined_call_operand.vmem [shape: f32[15,25], index: 1, kind: input, shape index: {}]
  %s2 = inlined_call_operand.vmem [shape: f32[25,54], index: 2, kind: input, shape index: {}]
  %s3 = inlined_call_operand.vmem [shape: f32[54,128], index: 3, kind: input, shape index: {}]
  %s4 = inlined_call_operand.vmem [shape: f32[8,128], index: 4, kind: input, shape index: {}]
  %s5 = inlined_call_operand.hbm [shape: f32[8,128], index: 5, kind: output, shape index: {}]
  %s6 = sld [smem:[#allocation0]]
  $region30: #{mlp_forward.1} parent=0
    _
  %s8 = ssub.s32 1, %s6
  %s9 = scalar_select 0, %s8, %s6
  $region1: #{mlp_forward.1} parent=0
    #allocation2 [shape = 'u8[4096]{0}', space=vmem, size = 0x1000, scoped, tag = 'output window, operand 0, single buffered']
    #allocation3 [shape = 's32[1]{0}', space=sflag, size = 0x4, scoped, tag = 'scoped memory for mlp_forward.1']
    %10 = vsyncpa [#allocation3], 0
    // Predicated region
    $region2: #{mlp_forward.1} parent=1 // pred_check
      _
    $region3: #{mlp_forward.1} parent=1 // pred_check_branch
      %12 = sbr.rel (0) target = $region5
    $region4: #{mlp_forward.1} parent=1 // pred_region
      _
    $region5: #{mlp_forward.1} parent=1 // pred_fallthru
      _
    // Predicated region
    $region6: #{mlp_forward.1} parent=1 // pred_check
      _
    $region7: #{mlp_forward.1} parent=1 // pred_check_branch
      %14 = sbr.rel (0) target = $region9
    $region8: #{mlp_forward.1} parent=1 // pred_region
      _
    $region9: #{mlp_forward.1} parent=1 // pred_fallthru
      _
    // Predicated region
    $region10: #{mlp_forward.1} parent=1 // pred_check
      _
    $region11: #{mlp_forward.1} parent=1 // pred_check_branch
      %16 = sbr.rel (0) target = $region13
    $region12: #{mlp_forward.1} parent=1 // pred_region
      _
    $region13: #{mlp_forward.1} parent=1 // pred_fallthru
      _
    // Predicated region
    $region14: #{mlp_forward.1} parent=1 // pred_check
      _
    $region15: #{mlp_forward.1} parent=1 // pred_check_branch
      %18 = sbr.rel (0) target = $region17
    $region16: #{mlp_forward.1} parent=1 // pred_region
      _
    $region17: #{mlp_forward.1} parent=1 // pred_fallthru
      _
    // Predicated region
    $region18: #{mlp_forward.1} parent=1 // pred_check
      _
    $region19: #{mlp_forward.1} parent=1 // pred_check_branch
      %20 = sbr.rel (0) target = $region21
    $region20: #{mlp_forward.1} parent=1 // pred_region
      _
    $region21: #{mlp_forward.1} parent=1 // pred_fallthru
      _
    %v21 = vld [vmem:[%s0] sm:$0xff]
    %v22 = vld [vmem:[%s4] sm:$0x1]
    %v23 = vld [vmem:[%s4 + $0x1] sm:$0x1]
    %v24 = vld [vmem:[%s4 + $0x2] sm:$0x1]
    %v25 = vld [vmem:[%s1] sm:$0xff]
    %v26 = vld [vmem:[%s1 + $0x8] sm:$0x7f]
    %v27 = vperm.slane %v22, 0
    %vm28 = vcmask 121856
    %v30 = vsel %vm28, %v21, 0
    %vm32 = vcmask 1046528
    %v34 = vsel %vm32, %v26, 0
    %36 = vmatpush.msra.mxu0 0.0
    %37 = vmatpush.msra.mxu0 0.0
    %38 = vmatpush.msra.mxu0 0.0
    %39 = vmatpush.msra.mxu0 0.0
    %40 = vmatpush.msra.mxu0 0.0
    %41 = vmatpush.msra.mxu0 0.0
    %42 = vmatpush.msra.mxu0 0.0
    %43 = vmatpush.msra.mxu0 0.0
    %44 = vmatpush.msra.mxu0 0.0
    %45 = vmatpush.msra.mxu0 0.0
    %46 = vmatpush.msra.mxu0 0.0
    %47 = vmatpush.msra.mxu0 0.0
    %48 = vmatpush.msra.mxu0 0.0
    %49 = vmatpush.msra.mxu0 0.0
    %50 = vmatpush.msra.mxu0 %v34
    %51 = vmatpush.msra.mxu0 %v25
    %52 = vmatmul.f32.gmra.mxu0 %v30
    %v53 = vpop.f32.mrf.mxu0
    %v54 = vadd.f32 %v27, %v53
    %55 = vdwg.mxu0
    %v56 = vxor.u32 %v54, 2147483648
    %v57 = vmul.f32 %v56, 1.442695
    %v58 = vpow.pop %v57
    %v59 = vadd.f32 %v58, 1.0
    %v60 = vrcp.pop %v59
    %v61 = vmul.f32 %v59, %v60
    %v62 = vsub.f32 1.0, %v61
    %v63 = vmul.f32 %v60, %v62
    %v64 = vadd.f32 %v60, %v63
    %vm65 = vweird.f32 %v59
    %vm66 = vweird.f32 %v60
    %vm67 = vmor %vm65, %vm66
    %v68 = vsel %vm67, %v60, %v64
    %v69 = vand.u32 2147483647, %v59
    %vm70 = vcmp.eq.f32.partialorder %v69, 8.507059e+37
    %v71 = vand.u32 %v59, 2147483648
    %v72 = vor.u32 1.1754944e-38, %v71
    %v73 = vsel %vm70, %v72, %v68
    %v74 = vmul.f32 1.0, %v73
    %v75 = vld [vmem:[%s2] sm:$0xff]
    %v76 = vld [vmem:[%s2 + $0x8] sm:$0xff]
    %v77 = vld [vmem:[%s2 + $0x10] sm:$0xff]
    %v78 = vld [vmem:[%s2 + $0x18] sm:$0x1]
    %v79 = vperm.slane %v23, 0
    %vm80 = vcmask 203776
    %v82 = vsel %vm80, %v74, 0
    %vm84 = vcmask 1040384
    %v86 = vsel %vm84, %v78, 0
    %88 = vmatpush.msra.mxu0 0.0
    %89 = vmatpush.msra.mxu0 0.0
    %90 = vmatpush.msra.mxu0 0.0
    %91 = vmatpush.msra.mxu0 0.0
    %92 = vmatpush.msra.mxu0 0.0
    %93 = vmatpush.msra.mxu0 0.0
    %94 = vmatpush.msra.mxu0 0.0
    %95 = vmatpush.msra.mxu0 0.0
    %96 = vmatpush.msra.mxu0 0.0
    %97 = vmatpush.msra.mxu0 0.0
    %98 = vmatpush.msra.mxu0 0.0
    %99 = vmatpush.msra.mxu0 0.0
    %100 = vmatpush.msra.mxu0 %v86
    %101 = vmatpush.msra.mxu0 %v77
    %102 = vmatpush.msra.mxu0 %v76
    %103 = vmatpush.msra.mxu0 %v75
    %104 = vmatmul.f32.gmra.mxu0 %v82
    %v105 = vpop.f32.mrf.mxu0
    %v106 = vadd.f32 %v79, %v105
    %107 = vdwg.mxu0
    %v108 = vxor.u32 %v106, 2147483648
    %v109 = vmul.f32 %v108, 1.442695
    %v110 = vpow.pop %v109
    %v111 = vadd.f32 %v110, 1.0
    %v112 = vrcp.pop %v111
    %v113 = vmul.f32 %v111, %v112
    %v114 = vsub.f32 1.0, %v113
    %v115 = vmul.f32 %v112, %v114
    %v116 = vadd.f32 %v112, %v115
    %vm117 = vweird.f32 %v111
    %vm118 = vweird.f32 %v112
    %vm119 = vmor %vm117, %vm118
    %v120 = vsel %vm119, %v112, %v116
    %v121 = vand.u32 2147483647, %v111
    %vm122 = vcmp.eq.f32.partialorder %v121, 8.507059e+37
    %v123 = vand.u32 %v111, 2147483648
    %v124 = vor.u32 1.1754944e-38, %v123
    %v125 = vsel %vm122, %v124, %v120
    %v126 = vmul.f32 1.0, %v125
    %v127 = vld [vmem:[%s3] sm:$0xff]
    %v128 = vld [vmem:[%s3 + $0x8] sm:$0xff]
    %v129 = vld [vmem:[%s3 + $0x10] sm:$0xff]
    %v130 = vld [vmem:[%s3 + $0x18] sm:$0xff]
    %v131 = vld [vmem:[%s3 + $0x20] sm:$0xff]
    %v132 = vld [vmem:[%s3 + $0x28] sm:$0xff]
    %v133 = vld [vmem:[%s3 + $0x30] sm:$0x3f]
    %v134 = vperm.slane %v24, 0
    %vm135 = vcmask 441344
    %v137 = vsel %vm135, %v126, 0
    %vm139 = vcmask 1045504
    %v141 = vsel %vm139, %v133, 0
    %143 = vmatpush.msra.mxu0 0.0
    %144 = vmatpush.msra.mxu0 0.0
    %145 = vmatpush.msra.mxu0 0.0
    %146 = vmatpush.msra.mxu0 0.0
    %147 = vmatpush.msra.mxu0 0.0
    %148 = vmatpush.msra.mxu0 0.0
    %149 = vmatpush.msra.mxu0 0.0
    %150 = vmatpush.msra.mxu0 0.0
    %151 = vmatpush.msra.mxu0 0.0
    %152 = vmatpush.msra.mxu0 %v141
    %153 = vmatpush.msra.mxu0 %v132
    %154 = vmatpush.msra.mxu0 %v131
    %155 = vmatpush.msra.mxu0 %v130
    %156 = vmatpush.msra.mxu0 %v129
    %157 = vmatpush.msra.mxu0 %v128
    %158 = vmatpush.msra.mxu0 %v127
    %159 = vmatmul.f32.gmra.mxu0 %v137
    %v160 = vpop.f32.mrf.mxu0
    %v161 = vadd.f32 %v134, %v160
    %162 = vdwg.mxu0
    %163 = vst [vmem:[#allocation2] sm:$0xff] %v161
    // Predicated region
    $region22: #{mlp_forward.1} parent=1 // pred_check
      _
    $region23: #{mlp_forward.1} parent=1 // pred_check_branch
      %165 = sbr.rel (0) target = $region25
    $region24: #{mlp_forward.1} parent=1 // pred_region
      %167 = vsyncadd [#allocation3], 0
      %s169 = sshll.u32 [#allocation2], 4
      %s170 = int_to_ptr.vmem [resolvable:$true] %s169
      %s171 = sshll.u32 %s5, 4
      %s172 = int_to_ptr.hbm [resolvable:$true] %s171
      %174 = dma.vmem_to_hbm [thread:$0]  %s170, 128, %s172, [#allocation3]
    $region25: #{mlp_forward.1} parent=1 // pred_fallthru
      _
    // Predicated region
    $region26: #{mlp_forward.1} parent=1 // pred_check
      _
    $region27: #{mlp_forward.1} parent=1 // pred_check_branch
      %176 = sbr.rel (0) target = $region29
    $region28: #{mlp_forward.1} parent=1 // pred_region
      %178 = dma.done [#allocation3], 128
    $region29: #{mlp_forward.1} parent=1 // pred_fallthru
      _
    %179 = vsyncpa [#allocation3], 1

</llo_original>
